<compile_context>
chip_gen: v7x
topology: tpu7x:2x2x1
jax: 0.10.0
libtpu: 0.0.40
codegen_flags: <defaults>
</compile_context>

<pallas_src>
import functools
from functools import reduce

import jax
import jax.numpy as jnp
from jax.experimental import pallas as pl
from jax.experimental.pallas import tpu as pltpu


def _round_up(n, m):
    return ((n + m - 1) // m) * m


def _mlp_kernel(act_ref, gru_ref, fc_ref, out_ref, *, in_size, hidden, out_size):
    f32 = jnp.float32
    bf16 = jnp.bfloat16
    I, H, O = in_size, hidden, out_size
    bb, P_in = act_ref.shape
    P_out = out_ref.shape[1]

    # --- unpack activation slab [x | h | m | 0...] and apply the mask ---------
    slab = act_ref[...]                                      # (bb, P_in) f32
    m = slab[:, I + H:I + H + 1]                             # (bb, 1)
    col = jax.lax.broadcasted_iota(jnp.int32, (bb, P_in), 1)
    # scale h-columns by the mask; x-columns untouched; padded columns map to zero
    # rows of the fused weight so their scaling is irrelevant.
    xs = slab * jnp.where(col < I, 1.0, m)                   # (bb, P_in) f32
    hm = xs[:, I:I + H]                                      # masked hidden state

    # --- fused GRU: one MXU matmul gives r | z | (gi_n+gh_n) | gh_n -----------
    W = gru_ref[0:P_in, :]                                   # (P_in, 4H) bf16
    b = gru_ref[P_in:P_in + 1, :].astype(f32)                # (1, 4H)
    g = jnp.dot(xs.astype(bf16), W, preferred_element_type=f32) + b

    r = jax.nn.sigmoid(g[:, 0:H])
    z = jax.nn.sigmoid(g[:, H:2 * H])
    gh_n = g[:, 3 * H:4 * H]                                 # h-part of the n gate
    n = jnp.tanh(g[:, 2 * H:3 * H] + (r - 1.0) * gh_n)       # == tanh(gi_n + r*gh_n)
    h_new = (1.0 - z) * n + z * hm

    # --- fc1 -> tanh -> fc2 -> tanh -> value head (8-row-aligned slab offsets) -
    r_w2 = _round_up(H, 8)
    r_wv = r_w2 + _round_up(O, 8)
    r_b1, r_b2, r_bv = r_wv + 8, r_wv + 16, r_wv + 24
    w1 = fc_ref[0:H, :]                                      # (H, O) bf16
    w2 = fc_ref[r_w2:r_w2 + O, :]                            # (O, O) bf16
    wv_row = fc_ref[r_wv:r_wv + 1, :].astype(f32)            # (1, O)
    b1 = fc_ref[r_b1:r_b1 + 1, :].astype(f32)                # (1, O)
    b2 = fc_ref[r_b2:r_b2 + 1, :].astype(f32)                # (1, O)
    bv = fc_ref[r_bv:r_bv + 1, 0:1].astype(f32)              # (1, 1)

    a1 = jnp.tanh(jnp.dot(h_new.astype(bf16), w1, preferred_element_type=f32) + b1)
    a2 = jnp.tanh(jnp.dot(a1.astype(bf16), w2, preferred_element_type=f32) + b2)
    # value head: N=1 matmul replaced by VPU multiply + lane reduction
    v = jnp.sum(a2 * wv_row, axis=-1, keepdims=True) + bv    # (bb, 1)

    # --- single fused lane-dense output: [a2 | h_new | value ... value] -------
    out_ref[:, 0:O] = a2
    out_ref[:, O:O + H] = h_new
    out_ref[:, O + H:] = jnp.broadcast_to(v, (bb, P_out - O - H))


def mlp_forward(x, hidden_state, masks, params, block_b=None):
    """x: (B, *input_shape), hidden_state: (B, H), masks: (B, 1)."""
    B = x.shape[0]
    I, H, O = params["sizes"]
    gru_pack = params["gru_pack"]                # (P_in + 8, 4H)  bf16
    fc_pack = params["fc_pack"]                  # (aligned rows, O) bf16
    P_in = _round_up(I + H + 1, 128)             # lane-padded activation slab width
    P_out = _round_up(O + H + 1, 128)            # lane-padded fused output width

    x2d = x.reshape(B, I).astype(jnp.float32)    # mirrors x.view(-1, input_size)
    h2d = hidden_state.reshape(B, H).astype(jnp.float32)
    m2d = masks.reshape(B, 1).astype(jnp.float32)
    act = jnp.concatenate(
        [x2d, h2d, m2d, jnp.zeros((B, P_in - I - H - 1), jnp.float32)], axis=1)

    # Batch tiling: single block for small B, 512-row tiles for large B (bigger tiles
    # amortize the ~0.35us/step grid overhead; still far under the VMEM limit).
    if block_b is None:
        block_b = B if B <= 512 else 512
    pad = (-B) % block_b
    if pad:
        act = jnp.pad(act, ((0, pad), (0, 0)))
    Bp = B + pad
    grid = (Bp // block_b,)

    kernel = functools.partial(_mlp_kernel, in_size=I, hidden=H, out_size=O)
    out = pl.pallas_call(
        kernel,
        out_shape=jax.ShapeDtypeStruct((Bp, P_out), jnp.float32),
        grid=grid,
        in_specs=[
            pl.BlockSpec((block_b, P_in), lambda i: (i, 0)),
            # Weight slabs: constant index_map -> stay VMEM-resident across tiles.
            pl.BlockSpec(gru_pack.shape, lambda i: (0, 0)),
            pl.BlockSpec(fc_pack.shape, lambda i: (0, 0)),
        ],
        out_specs=pl.BlockSpec((block_b, P_out), lambda i: (i, 0)),
        compiler_params=pltpu.CompilerParams(
            dimension_semantics=("parallel",)),
    )(act, gru_pack, fc_pack)

    out = out[:B]
    return out[:, 0:O], out[:, O:O + H], out[:, O + H:O + H + 1]


def make_params(key, input_size, hidden_size, output_size):
    """Deterministic synthetic parameters (same shapes as the PyTorch module),
    packed host-side (once) into two bf16 slabs for the kernel."""
    ks = jax.random.split(key, 8)
    s = 0.1

    def w(k, shape):
        return s * jax.random.normal(k, shape, dtype=jnp.float32)

    I, H, O = input_size, hidden_size, output_size

    # GRU weights, stored transposed: (in, out), gate order r, z, n along columns.
    w_ih = w(ks[0], (I, 3 * H))
    w_hh = w(ks[1], (H, 3 * H))
    b_ih = w(ks[2], (1, 3 * H))
    b_hh = w(ks[3], (1, 3 * H))

    # Fused GRU weight (P_in, 4H): cols 0:3H take [x | h_masked], cols 3H:4H give gh_n.
    P_in = _round_up(I + H + 1, 128)
    W_big = jnp.zeros((P_in, 4 * H), jnp.float32)
    W_big = W_big.at[0:I, 0:3 * H].set(w_ih)
    W_big = W_big.at[I:I + H, 0:3 * H].set(w_hh)
    W_big = W_big.at[I:I + H, 3 * H:4 * H].set(w_hh[:, 2 * H:3 * H])
    b_big = jnp.concatenate([b_ih + b_hh, b_hh[:, 2 * H:3 * H]], axis=1)  # (1, 4H)
    gru_pack = jnp.zeros((P_in + 8, 4 * H), jnp.float32)
    gru_pack = gru_pack.at[0:P_in, :].set(W_big)
    gru_pack = gru_pack.at[P_in, :].set(b_big[0])
    gru_pack = gru_pack.astype(jnp.bfloat16)

    # Linear layers, stored transposed (in, out); biases init to 0 (constant_(x, 0.0)).
    w1 = w(ks[4], (H, O))
    w2 = w(ks[5], (O, O))
    wv = w(ks[6], (O, 1))
    b1 = jnp.zeros((1, O), jnp.float32)
    b2 = jnp.zeros((1, O), jnp.float32)
    bv = jnp.zeros((1, 1), jnp.float32)

    r_w2 = _round_up(H, 8)
    r_wv = r_w2 + _round_up(O, 8)
    r_b1, r_b2, r_bv = r_wv + 8, r_wv + 16, r_wv + 24
    fc_pack = jnp.zeros((r_bv + 8, O), jnp.float32)
    fc_pack = fc_pack.at[0:H, :].set(w1)
    fc_pack = fc_pack.at[r_w2:r_w2 + O, :].set(w2)
    fc_pack = fc_pack.at[r_wv, :].set(wv[:, 0])
    fc_pack = fc_pack.at[r_b1, :].set(b1[0])
    fc_pack = fc_pack.at[r_b2, :].set(b2[0])
    fc_pack = fc_pack.at[r_bv, :].set(bv[0, 0])
    fc_pack = fc_pack.astype(jnp.bfloat16)

    return {
        "gru_pack": gru_pack, "fc_pack": fc_pack,
        "sizes": (I, H, O),
        # unpacked f32 copies kept only for the pure-JAX reference check
        "w_ih": w_ih, "w_hh": w_hh, "b_ih": b_ih, "b_hh": b_hh,
        "w1": w1, "b1": b1, "w2": w2, "b2": b2, "wv": wv, "bv": bv,
    }


def _reference(x, h, m, p):
    """Pure-JAX f32 reference (PyTorch GRU semantics) for correctness checking."""
    B = x.shape[0]
    x = x.reshape(B, -1)
    h = h * m
    H = h.shape[1]
    gi = x @ p["w_ih"] + p["b_ih"]
    gh = h @ p["w_hh"] + p["b_hh"]
    r = jax.nn.sigmoid(gi[:, :H] + gh[:, :H])
    z = jax.nn.sigmoid(gi[:, H:2 * H] + gh[:, H:2 * H])
    n = jnp.tanh(gi[:, 2 * H:] + r * gh[:, 2 * H:])
    hn = (1.0 - z) * n + z * h
    a1 = jnp.tanh(hn @ p["w1"] + p["b1"])
    a2 = jnp.tanh(a1 @ p["w2"] + p["b2"])
    v = a2 @ p["wv"] + p["bv"]
    return a2, hn, v


if __name__ == "__main__":
    # input_shape=(4,4) -> input_size=16; hidden_state_shape=(32,) -> 32; output_shape=(32,) -> 32
    B, input_shape, hidden_size, output_size = 8, (4, 4), 32, 32
    input_size = reduce(lambda a, b: a * b, input_shape)

    key = jax.random.PRNGKey(0)
    kx, kh, km, kp = jax.random.split(key, 4)
    x = jax.random.normal(kx, (B, *input_shape), dtype=jnp.float32)
    hidden_state = jax.random.normal(kh, (B, hidden_size), dtype=jnp.float32)
    masks = (jax.random.uniform(km, (B, 1)) > 0.3).astype(jnp.float32)

    params = make_params(kp, input_size, hidden_size, output_size)

    out_x, h_n, value = mlp_forward(x, hidden_state, masks, params)
    jax.block_until_ready((out_x, h_n, value))

    ref_x, ref_h, ref_v = _reference(x, hidden_state, masks, params)
    # bf16 weight slabs (f32 accumulation) -> tolerance relaxed vs the f32 reference.
    assert jnp.allclose(out_x, ref_x, atol=3e-2), "fc output mismatch"
    assert jnp.allclose(h_n, ref_h, atol=3e-2), "h_n mismatch"
    assert jnp.allclose(value, ref_v, atol=3e-2), "value mismatch"

    print("KERNEL_OK")
</pallas_src>

<mosaic_0001>
module attributes {stable_mosaic.version = 11 : i64} {
  func.func @_mlp_kernel(%arg0: i32, %arg1: memref<8x128xf32, #tpu.memory_space<vmem>>, %arg2: memref<136x128xbf16, #tpu.memory_space<vmem>>, %arg3: memref<96x32xbf16, #tpu.memory_space<vmem>>, %arg4: memref<8x128xf32, #tpu.memory_space<vmem>>) attributes {dimension_semantics = [#tpu.dimension_semantics<parallel>], iteration_bounds = array<i64: 1>, scalar_prefetch = 0 : i64, scratch_operands = 0 : i64, tpu.core_type = #tpu.core_type<tc>, window_params = [{transform_indices = @transform_0, window_bounds = array<i64: 8, 128>}, {pipeline_mode = #tpu.pipeline_mode<synchronous>, transform_indices = @transform_1, window_bounds = array<i64: 136, 128>}, {pipeline_mode = #tpu.pipeline_mode<synchronous>, transform_indices = @transform_2, window_bounds = array<i64: 96, 32>}, {transform_indices = @transform_3, window_bounds = array<i64: 8, 128>}]} {
    %c0 = arith.constant 0 : index
    %c0_0 = arith.constant 0 : index
    %0 = vector.load %arg1[%c0, %c0_0] : memref<8x128xf32, #tpu.memory_space<vmem>>, vector<8x128xf32>
    %1 = vector.extract_strided_slice %0 {offsets = [0, 48], sizes = [8, 1], strides = [1, 1]} : vector<8x128xf32> to vector<8x1xf32>
    %2 = tpu.iota {dimensions = array<i32: 1>} : vector<8x128xi32>
    %c16_i32 = arith.constant 16 : i32
    %3 = vector.broadcast %c16_i32 : i32 to vector<8x128xi32>
    %4 = arith.cmpi slt, %2, %3 : vector<8x128xi32>
    %cst = arith.constant 1.000000e+00 : f32
    %5 = vector.broadcast %cst : f32 to vector<8x128xf32>
    %6 = vector.shape_cast %1 : vector<8x1xf32> to vector<8x1xf32>
    %7 = vector.broadcast %6 : vector<8x1xf32> to vector<8x128xf32>
    %8 = arith.select %4, %5, %7 : vector<8x128xi1>, vector<8x128xf32>
    %9 = arith.mulf %0, %8 : vector<8x128xf32>
    %10 = vector.extract_strided_slice %9 {offsets = [0, 16], sizes = [8, 32], strides = [1, 1]} : vector<8x128xf32> to vector<8x32xf32>
    %c0_1 = arith.constant 0 : index
    %c0_2 = arith.constant 0 : index
    %11 = vector.load %arg2[%c0_1, %c0_2] : memref<136x128xbf16, #tpu.memory_space<vmem>>, vector<128x128xbf16>
    %c128 = arith.constant 128 : index
    %c0_3 = arith.constant 0 : index
    %12 = vector.load %arg2[%c128, %c0_3] : memref<136x128xbf16, #tpu.memory_space<vmem>>, vector<1x128xbf16>
    %13 = arith.extf %12 : vector<1x128xbf16> to vector<1x128xf32>
    %14 = arith.truncf %9 : vector<8x128xf32> to vector<8x128xbf16>
    %cst_4 = arith.constant dense<0.000000e+00> : vector<8x128xf32>
    %15 = tpu.matmul %14, %11, %cst_4 {dimension_numbers = #tpu.dot_dimension_numbers<[1], [0], [0], [1], [0, 0, 1, 1], [], []>} : vector<8x128xbf16>, vector<128x128xbf16>, vector<8x128xf32> -> vector<8x128xf32>
    %16 = vector.broadcast %13 : vector<1x128xf32> to vector<8x128xf32>
    %17 = arith.addf %15, %16 : vector<8x128xf32>
    %18 = vector.extract_strided_slice %17 {offsets = [0, 0], sizes = [8, 32], strides = [1, 1]} : vector<8x128xf32> to vector<8x32xf32>
    %19 = arith.negf %18 : vector<8x32xf32>
    %20 = math.exp %19 : vector<8x32xf32>
    %cst_5 = arith.constant 1.000000e+00 : f32
    %21 = vector.broadcast %cst_5 : f32 to vector<8x32xf32>
    %22 = arith.addf %21, %20 : vector<8x32xf32>
    %23 = arith.divf %21, %22 : vector<8x32xf32>
    %24 = vector.extract_strided_slice %17 {offsets = [0, 32], sizes = [8, 32], strides = [1, 1]} : vector<8x128xf32> to vector<8x32xf32>
    %25 = arith.negf %24 : vector<8x32xf32>
    %26 = math.exp %25 : vector<8x32xf32>
    %cst_6 = arith.constant 1.000000e+00 : f32
    %27 = vector.broadcast %cst_6 : f32 to vector<8x32xf32>
    %28 = arith.addf %27, %26 : vector<8x32xf32>
    %29 = arith.divf %27, %28 : vector<8x32xf32>
    %30 = vector.extract_strided_slice %17 {offsets = [0, 96], sizes = [8, 32], strides = [1, 1]} : vector<8x128xf32> to vector<8x32xf32>
    %31 = vector.extract_strided_slice %17 {offsets = [0, 64], sizes = [8, 32], strides = [1, 1]} : vector<8x128xf32> to vector<8x32xf32>
    %cst_7 = arith.constant 1.000000e+00 : f32
    %32 = vector.broadcast %cst_7 : f32 to vector<8x32xf32>
    %33 = arith.subf %23, %32 : vector<8x32xf32>
    %34 = arith.mulf %33, %30 : vector<8x32xf32>
    %35 = arith.addf %31, %34 : vector<8x32xf32>
    %36 = math.tanh %35 : vector<8x32xf32>
    %cst_8 = arith.constant 1.000000e+00 : f32
    %37 = vector.broadcast %cst_8 : f32 to vector<8x32xf32>
    %38 = arith.subf %37, %29 : vector<8x32xf32>
    %39 = arith.mulf %38, %36 : vector<8x32xf32>
    %40 = arith.mulf %29, %10 : vector<8x32xf32>
    %41 = arith.addf %39, %40 : vector<8x32xf32>
    %c0_9 = arith.constant 0 : index
    %c0_10 = arith.constant 0 : index
    %42 = vector.load %arg3[%c0_9, %c0_10] : memref<96x32xbf16, #tpu.memory_space<vmem>>, vector<32x32xbf16>
    %c32 = arith.constant 32 : index
    %c0_11 = arith.constant 0 : index
    %43 = vector.load %arg3[%c32, %c0_11] : memref<96x32xbf16, #tpu.memory_space<vmem>>, vector<32x32xbf16>
    %c64 = arith.constant 64 : index
    %c0_12 = arith.constant 0 : index
    %44 = vector.load %arg3[%c64, %c0_12] : memref<96x32xbf16, #tpu.memory_space<vmem>>, vector<1x32xbf16>
    %45 = arith.extf %44 : vector<1x32xbf16> to vector<1x32xf32>
    %c72 = arith.constant 72 : index
    %c0_13 = arith.constant 0 : index
    %46 = vector.load %arg3[%c72, %c0_13] : memref<96x32xbf16, #tpu.memory_space<vmem>>, vector<1x32xbf16>
    %47 = arith.extf %46 : vector<1x32xbf16> to vector<1x32xf32>
    %c80 = arith.constant 80 : index
    %c0_14 = arith.constant 0 : index
    %48 = vector.load %arg3[%c80, %c0_14] : memref<96x32xbf16, #tpu.memory_space<vmem>>, vector<1x32xbf16>
    %49 = arith.extf %48 : vector<1x32xbf16> to vector<1x32xf32>
    %c88 = arith.constant 88 : index
    %c0_15 = arith.constant 0 : index
    %50 = vector.load %arg3[%c88, %c0_15] : memref<96x32xbf16, #tpu.memory_space<vmem>>, vector<1x1xbf16>
    %51 = arith.extf %50 : vector<1x1xbf16> to vector<1x1xf32>
    %52 = arith.truncf %41 : vector<8x32xf32> to vector<8x32xbf16>
    %cst_16 = arith.constant dense<0.000000e+00> : vector<8x32xf32>
    %53 = tpu.matmul %52, %42, %cst_16 {dimension_numbers = #tpu.dot_dimension_numbers<[1], [0], [0], [1], [0, 0, 1, 1], [], []>} : vector<8x32xbf16>, vector<32x32xbf16>, vector<8x32xf32> -> vector<8x32xf32>
    %54 = vector.broadcast %47 : vector<1x32xf32> to vector<8x32xf32>
    %55 = arith.addf %53, %54 : vector<8x32xf32>
    %56 = math.tanh %55 : vector<8x32xf32>
    %57 = arith.truncf %56 : vector<8x32xf32> to vector<8x32xbf16>
    %cst_17 = arith.constant dense<0.000000e+00> : vector<8x32xf32>
    %58 = tpu.matmul %57, %43, %cst_17 {dimension_numbers = #tpu.dot_dimension_numbers<[1], [0], [0], [1], [0, 0, 1, 1], [], []>} : vector<8x32xbf16>, vector<32x32xbf16>, vector<8x32xf32> -> vector<8x32xf32>
    %59 = vector.broadcast %49 : vector<1x32xf32> to vector<8x32xf32>
    %60 = arith.addf %58, %59 : vector<8x32xf32>
    %61 = math.tanh %60 : vector<8x32xf32>
    %62 = vector.broadcast %45 : vector<1x32xf32> to vector<8x32xf32>
    %63 = arith.mulf %61, %62 : vector<8x32xf32>
    %cst_18 = arith.constant dense<0.000000e+00> : vector<8xf32>
    %64 = vector.multi_reduction <add>, %63, %cst_18 [1] : vector<8x32xf32> to vector<8xf32>
    %65 = vector.shape_cast %64 : vector<8xf32> to vector<8x1xf32>
    %66 = vector.broadcast %51 : vector<1x1xf32> to vector<8x1xf32>
    %67 = arith.addf %65, %66 : vector<8x1xf32>
    %c0_19 = arith.constant 0 : index
    %c0_20 = arith.constant 0 : index
    %68 = vector.load %arg4[%c0_19, %c0_20] : memref<8x128xf32, #tpu.memory_space<vmem>>, vector<8x32xf32>
    tpu.vector_store %arg4[%c0_19, %c0_20], %61 {strides = array<i32>} : memref<8x128xf32, #tpu.memory_space<vmem>>, vector<8x32xf32>,
    %c0_21 = arith.constant 0 : index
    %c32_22 = arith.constant 32 : index
    %69 = vector.load %arg4[%c0_21, %c32_22] : memref<8x128xf32, #tpu.memory_space<vmem>>, vector<8x32xf32>
    tpu.vector_store %arg4[%c0_21, %c32_22], %41 {strides = array<i32>} : memref<8x128xf32, #tpu.memory_space<vmem>>, vector<8x32xf32>,
    %70 = vector.shape_cast %67 : vector<8x1xf32> to vector<8x1xf32>
    %71 = vector.broadcast %70 : vector<8x1xf32> to vector<8x64xf32>
    %c0_23 = arith.constant 0 : index
    %c64_24 = arith.constant 64 : index
    %72 = vector.load %arg4[%c0_23, %c64_24] : memref<8x128xf32, #tpu.memory_space<vmem>>, vector<8x64xf32>
    tpu.vector_store %arg4[%c0_23, %c64_24], %71 {strides = array<i32>} : memref<8x128xf32, #tpu.memory_space<vmem>>, vector<8x64xf32>,
    return
  }
  func.func @transform_0(%arg0: i32) -> (i32, i32) {
    %c0_i32 = arith.constant 0 : i32
    %c0_i32_0 = arith.constant 0 : i32
    return %arg0, %c0_i32 : i32, i32
  }
  func.func @transform_1(%arg0: i32) -> (i32, i32) {
    %c0_i32 = arith.constant 0 : i32
    %c0_i32_0 = arith.constant 0 : i32
    %c0_i32_1 = arith.constant 0 : i32
    return %c0_i32, %c0_i32_0 : i32, i32
  }
  func.func @transform_2(%arg0: i32) -> (i32, i32) {
    %c0_i32 = arith.constant 0 : i32
    %c0_i32_0 = arith.constant 0 : i32
    %c0_i32_1 = arith.constant 0 : i32
    return %c0_i32, %c0_i32_0 : i32, i32
  }
  func.func @transform_3(%arg0: i32) -> (i32, i32) {
    %c0_i32 = arith.constant 0 : i32
    %c0_i32_0 = arith.constant 0 : i32
    return %arg0, %c0_i32 : i32, i32
  }
}

</mosaic_0001>

<llo_original>
// kernel: tpu_custom_call.1
$region0: #{tpu_custom_call.1}
  #allocation0 [shape = 'u32[]', space=smem, size = 0x4, offset = 0x4, fixed_abs, tag = 'smem constant byte address 0x4 - core index']
  #allocation1 [shape = 'u32[144,128]{1,0:T(1,128)}', space=vmem, size = 0x12000, scoped, tag = 'internal scratch']
  %s0 = inlined_call_operand.vmem [shape: f32[8,128], index: 0, kind: input, shape index: {}]
  %s1 = inlined_call_operand.hbm [shape: bf16[136,128], index: 1, kind: input, shape index: {}]
  %s2 = inlined_call_operand.vmem [shape: bf16[96,32], index: 2, kind: input, shape index: {}]
  %s3 = inlined_call_operand.hbm [shape: f32[8,128], index: 3, kind: output, shape index: {}]
  %s4 = sld [smem:[#allocation0]]
  $region26: #{tpu_custom_call.1} parent=0
    _
  %s6 = ssub.s32 1, %s4
  %s7 = scalar_select 0, %s6, %s4
  $region1: #{tpu_custom_call.1} parent=0
    #allocation2 [shape = 'u8[34816]{0}', space=vmem, size = 0x8800, scoped, tag = 'input window, operand 1, single buffered']
    #allocation3 [shape = 's32[1]{0}', space=sflag, size = 0x4, scoped, tag = 'scoped memory for tpu_custom_call.1']
    #allocation4 [shape = 's32[1]{0}', space=sflag, size = 0x4, scoped, tag = 'scoped memory for tpu_custom_call.1']
    #allocation5 [shape = 'u8[4096]{0}', space=vmem, size = 0x1000, scoped, tag = 'output window, operand 0, single buffered']
    %8 = vsyncpa [#allocation3], 0
    %9 = vsyncpa [#allocation4], 0
    // Predicated region
    $region2: #{tpu_custom_call.1} parent=1 // pred_check
      _
    $region3: #{tpu_custom_call.1} parent=1 // pred_check_branch
      %11 = sbr.rel (0) target = $region5
    $region4: #{tpu_custom_call.1} parent=1 // pred_region
      _
    $region5: #{tpu_custom_call.1} parent=1 // pred_fallthru
      _
    // Predicated region
    $region6: #{tpu_custom_call.1} parent=1 // pred_check
      _
    $region7: #{tpu_custom_call.1} parent=1 // pred_check_branch
      %13 = sbr.rel (0) target = $region9
    $region8: #{tpu_custom_call.1} parent=1 // pred_region
      %s15 = ssub.s32 1088, 1088
      %16 = vsyncadd [#allocation3], %s15
      %s17 = sshll.u32 [#allocation2], 4
      %s18 = int_to_ptr.vmem [resolvable:$true] %s17
      %23 = dma.hbm_to_vmem [thread:$0]  %s1, 1088, %s18, [#allocation3], 64, 64, 4
    $region9: #{tpu_custom_call.1} parent=1 // pred_fallthru
      _
    // Predicated region
    $region10: #{tpu_custom_call.1} parent=1 // pred_check
      _
    $region11: #{tpu_custom_call.1} parent=1 // pred_check_branch
      %25 = sbr.rel (0) target = $region13
    $region12: #{tpu_custom_call.1} parent=1 // pred_region
      _
    $region13: #{tpu_custom_call.1} parent=1 // pred_fallthru
      _
    // Predicated region
    $region14: #{tpu_custom_call.1} parent=1 // pred_check
      _
    $region15: #{tpu_custom_call.1} parent=1 // pred_check_branch
      %27 = sbr.rel (0) target = $region17
    $region16: #{tpu_custom_call.1} parent=1 // pred_region
      %28 = dma.done [#allocation3], 1088
    $region17: #{tpu_custom_call.1} parent=1 // pred_fallthru
      _
    %v30 = vld [vmem:[%s0] sm:$0xff]
    %v31 = vlaneseq
    %v32 = vand.u32 %v31, 127
    %vm33 = vcmp.lt.s32.totalorder %v32, 16
    %35 = vset.pattern.permute.xlu0 48
    %36 = vperm.xlu0 %35, %v30
    %v37 = vpop.permute.xlu0 %36
    %v39 = vsel %vm33, 1.0, %v37
    %v40 = vmul.f32 %v30, %v39
    %v41 = vld [vmem:[#allocation2] sm:$0xf]
    %v42 = vld [vmem:[#allocation2 + $0x4] sm:$0xf]
    %v43 = vld [vmem:[#allocation2 + $0x8] sm:$0xf]
    %v44 = vld [vmem:[#allocation2 + $0xc] sm:$0xf]
    %v45 = vld [vmem:[#allocation2 + $0x10] sm:$0xf]
    %v46 = vld [vmem:[#allocation2 + $0x14] sm:$0xf]
    %v47 = vld [vmem:[#allocation2 + $0x18] sm:$0xf]
    %v48 = vld [vmem:[#allocation2 + $0x1c] sm:$0xf]
    %v49 = vld [vmem:[#allocation2 + $0x20] sm:$0xf]
    %v50 = vld [vmem:[#allocation2 + $0x24] sm:$0xf]
    %v51 = vld [vmem:[#allocation2 + $0x28] sm:$0xf]
    %v52 = vld [vmem:[#allocation2 + $0x2c] sm:$0xf]
    %v53 = vld [vmem:[#allocation2 + $0x30] sm:$0xf]
    %v54 = vld [vmem:[#allocation2 + $0x34] sm:$0xf]
    %v55 = vld [vmem:[#allocation2 + $0x38] sm:$0xf]
    %v56 = vld [vmem:[#allocation2 + $0x3c] sm:$0xf]
    %v57 = vld [vmem:[#allocation2 + $0x40] sm:$0x1]
    %v58 = vunpack.c.l.bf16 %v57
    %v59 = vpack.c.bf16 %v40, %v40
    %v60 = vlaneseq
    %v61 = vshrl.u32 %v60, 7
    %v62 = vsub.s32 0, %v61
    %v63 = vrot.slane %v58, %v62
    %v80 = vunpack.c.l.b16 %v41
    %v81 = vunpack.c.l.b16 %v42
    %v82 = vunpack.c.l.b16 %v43
    %v83 = vunpack.c.l.b16 %v44
    %v84 = vunpack.c.l.b16 %v45
    %v85 = vunpack.c.l.b16 %v46
    %v86 = vunpack.c.l.b16 %v47
    %v87 = vunpack.c.l.b16 %v48
    %v88 = vunpack.c.l.b16 %v49
    %v89 = vunpack.c.l.b16 %v50
    %v90 = vunpack.c.l.b16 %v51
    %v91 = vunpack.c.l.b16 %v52
    %v92 = vunpack.c.l.b16 %v53
    %v93 = vunpack.c.l.b16 %v54
    %v94 = vunpack.c.l.b16 %v55
    %v95 = vunpack.c.l.b16 %v56
    %v96 = vpack.c.b16 %v81, %v80
    %v97 = vpack.c.b16 %v83, %v82
    %v98 = vpack.c.b16 %v85, %v84
    %v99 = vpack.c.b16 %v87, %v86
    %v100 = vpack.c.b16 %v89, %v88
    %v101 = vpack.c.b16 %v91, %v90
    %v102 = vpack.c.b16 %v93, %v92
    %v103 = vpack.c.b16 %v95, %v94
    %112 = vmatprep.subr.bf16.mxu0 0
    %113 = vmatpush1.bf16.msra.mxu0 %v96
    %114 = vmatprep.subr.bf16.mxu0 0
    %115 = vmatpush1.bf16.msra.mxu0 %v97
    %116 = vmatprep.subr.bf16.mxu0 0
    %117 = vmatpush1.bf16.msra.mxu0 %v98
    %118 = vmatprep.subr.bf16.mxu0 0
    %119 = vmatpush1.bf16.msra.mxu0 %v99
    %120 = vmatprep.subr.bf16.mxu0 0
    %121 = vmatpush1.bf16.msra.mxu0 %v100
    %122 = vmatprep.subr.bf16.mxu0 0
    %123 = vmatpush1.bf16.msra.mxu0 %v101
    %124 = vmatprep.subr.bf16.mxu0 0
    %125 = vmatpush1.bf16.msra.mxu0 %v102
    %126 = vmatprep.subr.bf16.mxu0 0
    %127 = vmatpush1.bf16.msra.mxu0 %v103
    %128 = vmatprep.subr.bf16.mxu0 0
    %129 = vmatpush1.bf16.msra.mxu0 0
    %130 = vmatprep.subr.bf16.mxu0 0
    %131 = vmatpush1.bf16.msra.mxu0 0
    %132 = vmatprep.subr.bf16.mxu0 0
    %133 = vmatpush1.bf16.msra.mxu0 0
    %134 = vmatprep.subr.bf16.mxu0 0
    %135 = vmatpush1.bf16.msra.mxu0 0
    %136 = vmatprep.subr.bf16.mxu0 0
    %137 = vmatpush1.bf16.msra.mxu0 0
    %138 = vmatprep.subr.bf16.mxu0 0
    %139 = vmatpush1.bf16.msra.mxu0 0
    %140 = vmatprep.subr.bf16.mxu0 0
    %141 = vmatpush1.bf16.msra.mxu0 0
    %142 = vmatprep.subr.bf16.mxu0 0
    %143 = vmatpush1.bf16.msra.mxu0 0
    %144 = vmatprep.mubr.bf16.mxu0 0
    %145 = vmatmul.mubr.bf16.gmra.mrb[0].mxu0 %v59
    %v146 = vpop.f32.mrb[0].mxu0
    %v147 = vadd.f32 %v63, %v146
    %v148 = vpop.f32.mrb[0].mxu0
    %v149 = vpop.f32.mrb[0].mxu0
    %v150 = vpop.f32.mrb[0].mxu0
    %151 = vdwg.mxu0
    %v152 = vxor.u32 %v147, 2147483648
    %v153 = vmul.f32 %v152, 1.442695
    %v154 = vpow.pop %v153
    %v155 = vadd.f32 %v154, 1.0
    %v156 = vrcp.pop %v155
    %v157 = vmul.f32 1.0, %v156
    %v158 = vsub.f32 %v157, 1.0
    %160 = vrot.lane.b32.xlu0 %v147, 32
    %v161 = vpop.permute.xlu0 %160
    %v163 = vmul.f32 %v158, %v161
    %165 = vrot.lane.b32.xlu0 %v163, 64
    %v166 = vpop.permute.xlu0 %165
    %v168 = vadd.f32 %v147, %v166
    %v169 = vtanh.pop %v168
    %v170 = vsub.f32 1.0, %v157
    %172 = vrot.lane.b32.xlu0 %v169, 96
    %v173 = vpop.permute.xlu0 %172
    %v175 = vmul.f32 %v170, %v173
    %177 = vrot.lane.b32.xlu0 %v40, 16
    %v178 = vpop.permute.xlu0 %177
    %v180 = vmul.f32 %v157, %v178
    %v181 = vadd.f32 %v175, %v180
    %v182 = vld [vmem:[%s2] sm:$0xf]
    %v183 = vld [vmem:[%s2 + $0x4] sm:$0xf]
    %v184 = vld [vmem:[%s2 + $0x8] sm:$0xf]
    %v185 = vld [vmem:[%s2 + $0xc] sm:$0xf]
    %v186 = vld [vmem:[%s2 + $0x10] sm:$0xf]
    %v187 = vld [vmem:[%s2 + $0x14] sm:$0xf]
    %v188 = vld [vmem:[%s2 + $0x18] sm:$0xf]
    %v189 = vld [vmem:[%s2 + $0x1c] sm:$0xf]
    %v190 = vld [vmem:[%s2 + $0x20] sm:$0x1]
    %v191 = vunpack.c.l.bf16 %v190
    %v192 = vld [vmem:[%s2 + $0x24] sm:$0x1]
    %v193 = vunpack.c.l.bf16 %v192
    %v194 = vld [vmem:[%s2 + $0x28] sm:$0x1]
    %v195 = vunpack.c.l.bf16 %v194
    %v196 = vld [vmem:[%s2 + $0x2c] sm:$0x1]
    %v197 = vunpack.c.l.bf16 %v196
    %v198 = vpack.c.bf16 %v181, %v181
    %v199 = vlaneseq
    %v200 = vshrl.u32 %v199, 7
    %v201 = vsub.s32 0, %v200
    %v202 = vrot.slane %v193, %v201
    %204 = vrot.lane.b32.xlu0 %v198, 96
    %v205 = vpop.permute.xlu0 %204
    %v210 = vunpack.c.l.b16 %v182
    %v211 = vunpack.c.l.b16 %v183
    %v212 = vunpack.c.l.b16 %v184
    %v213 = vunpack.c.l.b16 %v185
    %v214 = vpack.c.b16 %v211, %v210
    %v215 = vpack.c.b16 %v213, %v212
    %vm218 = vcmask 261120
    %v220 = vsel %vm218, %v205, 0
    %222 = vmatprep.subr.bf16.mxu0 0
    %223 = vmatpush1.bf16.msra.mxu0 %v214
    %224 = vmatprep.subr.bf16.mxu0 0
    %225 = vmatpush1.bf16.msra.mxu0 %v215
    %226 = vmatprep.subr.bf16.mxu0 0
    %227 = vmatpush1.bf16.msra.mxu0 0
    %228 = vmatprep.subr.bf16.mxu0 0
    %229 = vmatpush1.bf16.msra.mxu0 0
    %230 = vmatprep.subr.bf16.mxu0 0
    %231 = vmatpush1.bf16.msra.mxu0 0
    %232 = vmatprep.subr.bf16.mxu0 0
    %233 = vmatpush1.bf16.msra.mxu0 0
    %234 = vmatprep.subr.bf16.mxu0 0
    %235 = vmatpush1.bf16.msra.mxu0 0
    %236 = vmatprep.subr.bf16.mxu0 0
    %237 = vmatpush1.bf16.msra.mxu0 0
    %238 = vmatprep.subr.bf16.mxu0 0
    %239 = vmatpush1.bf16.msra.mxu0 0
    %240 = vmatprep.subr.bf16.mxu0 0
    %241 = vmatpush1.bf16.msra.mxu0 0
    %242 = vmatprep.subr.bf16.mxu0 0
    %243 = vmatpush1.bf16.msra.mxu0 0
    %244 = vmatprep.subr.bf16.mxu0 0
    %245 = vmatpush1.bf16.msra.mxu0 0
    %246 = vmatprep.subr.bf16.mxu0 0
    %247 = vmatpush1.bf16.msra.mxu0 0
    %248 = vmatprep.subr.bf16.mxu0 0
    %249 = vmatpush1.bf16.msra.mxu0 0
    %250 = vmatprep.subr.bf16.mxu0 0
    %251 = vmatpush1.bf16.msra.mxu0 0
    %252 = vmatprep.subr.bf16.mxu0 0
    %253 = vmatpush1.bf16.msra.mxu0 0
    %254 = vmatprep.mubr.bf16.mxu0 0
    %255 = vmatmul.mubr.bf16.gmra.mrb[0].mxu0 %v220
    %v256 = vpop.f32.mrb[0].mxu0
    %v257 = vadd.f32 %v202, %v256
    %v258 = vpop.f32.mrb[0].mxu0
    %v259 = vpop.f32.mrb[0].mxu0
    %v260 = vpop.f32.mrb[0].mxu0
    %261 = vdwg.mxu0
    %v262 = vtanh.pop %v257
    %v263 = vpack.c.bf16 %v262, %v262
    %v264 = vlaneseq
    %v265 = vshrl.u32 %v264, 7
    %v266 = vsub.s32 0, %v265
    %v267 = vrot.slane %v195, %v266
    %v272 = vunpack.c.l.b16 %v186
    %v273 = vunpack.c.l.b16 %v187
    %v274 = vunpack.c.l.b16 %v188
    %v275 = vunpack.c.l.b16 %v189
    %v276 = vpack.c.b16 %v273, %v272
    %v277 = vpack.c.b16 %v275, %v274
    %v281 = vsel %vm218, %v263, 0
    %283 = vmatprep.subr.bf16.mxu0 0
    %284 = vmatpush1.bf16.msra.mxu0 %v276
    %285 = vmatprep.subr.bf16.mxu0 0
    %286 = vmatpush1.bf16.msra.mxu0 %v277
    %287 = vmatprep.subr.bf16.mxu0 0
    %288 = vmatpush1.bf16.msra.mxu0 0
    %289 = vmatprep.subr.bf16.mxu0 0
    %290 = vmatpush1.bf16.msra.mxu0 0
    %291 = vmatprep.subr.bf16.mxu0 0
    %292 = vmatpush1.bf16.msra.mxu0 0
    %293 = vmatprep.subr.bf16.mxu0 0
    %294 = vmatpush1.bf16.msra.mxu0 0
    %295 = vmatprep.subr.bf16.mxu0 0
    %296 = vmatpush1.bf16.msra.mxu0 0
    %297 = vmatprep.subr.bf16.mxu0 0
    %298 = vmatpush1.bf16.msra.mxu0 0
    %299 = vmatprep.subr.bf16.mxu0 0
    %300 = vmatpush1.bf16.msra.mxu0 0
    %301 = vmatprep.subr.bf16.mxu0 0
    %302 = vmatpush1.bf16.msra.mxu0 0
    %303 = vmatprep.subr.bf16.mxu0 0
    %304 = vmatpush1.bf16.msra.mxu0 0
    %305 = vmatprep.subr.bf16.mxu0 0
    %306 = vmatpush1.bf16.msra.mxu0 0
    %307 = vmatprep.subr.bf16.mxu0 0
    %308 = vmatpush1.bf16.msra.mxu0 0
    %309 = vmatprep.subr.bf16.mxu0 0
    %310 = vmatpush1.bf16.msra.mxu0 0
    %311 = vmatprep.subr.bf16.mxu0 0
    %312 = vmatpush1.bf16.msra.mxu0 0
    %313 = vmatprep.subr.bf16.mxu0 0
    %314 = vmatpush1.bf16.msra.mxu0 0
    %315 = vmatprep.mubr.bf16.mxu0 0
    %316 = vmatmul.mubr.bf16.gmra.mrb[0].mxu0 %v281
    %v317 = vpop.f32.mrb[0].mxu0
    %v318 = vadd.f32 %v267, %v317
    %v319 = vpop.f32.mrb[0].mxu0
    %v320 = vpop.f32.mrb[0].mxu0
    %v321 = vpop.f32.mrb[0].mxu0
    %322 = vdwg.mxu0
    %v323 = vtanh.pop %v318
    %v324 = vlaneseq
    %v325 = vshrl.u32 %v324, 7
    %v326 = vsub.s32 0, %v325
    %v327 = vrot.slane %v191, %v326
    %v328 = vmul.f32 %v323, %v327
    %v329 = vsel %vm218, %v328, 0.0
    %330 = vadd.xlane.f32.xlu0 %v329
    %v331 = vpop.xlane.xlu0 %330
    %v332 = vlaneseq
    %v333 = vshrl.u32 %v332, 7
    %v334 = vsub.s32 0, %v333
    %v335 = vrot.slane %v197, %v334
    %v336 = vadd.f32 %v331, %v335
    %337 = vst.msk [vmem:[#allocation5] sm:$0xff] %vm218, %v323
    %vm338 = vcmask 523520
    %339 = vst.msk [vmem:[#allocation5] sm:$0xff] %vm338, %v181
    %341 = vset.pattern.permute.xlu0 0
    %342 = vperm.xlu0 %341, %v336
    %v343 = vpop.permute.xlu0 %342
    %vm345 = vcmask 1048064
    %346 = vst.msk [vmem:[#allocation5] sm:$0xff] %vm345, %v343
    // Predicated region
    $region18: #{tpu_custom_call.1} parent=1 // pred_check
      _
    $region19: #{tpu_custom_call.1} parent=1 // pred_check_branch
      %348 = sbr.rel (0) target = $region21
    $region20: #{tpu_custom_call.1} parent=1 // pred_region
      %s350 = ssub.s32 128, 128
      %351 = vsyncadd [#allocation4], %s350
      %s353 = sshll.u32 [#allocation5], 4
      %s354 = int_to_ptr.vmem [resolvable:$true] %s353
      %356 = dma.vmem_to_hbm [thread:$0]  %s354, 128, %s3, [#allocation4]
    $region21: #{tpu_custom_call.1} parent=1 // pred_fallthru
      _
    // Predicated region
    $region22: #{tpu_custom_call.1} parent=1 // pred_check
      _
    $region23: #{tpu_custom_call.1} parent=1 // pred_check_branch
      %358 = sbr.rel (0) target = $region25
    $region24: #{tpu_custom_call.1} parent=1 // pred_region
      %359 = dma.done [#allocation4], 128
    $region25: #{tpu_custom_call.1} parent=1 // pred_fallthru
      _
    %360 = vsyncpa [#allocation3], 1
    %361 = vsyncpa [#allocation4], 1

</llo_original>
